<compile_context>
chip_gen: v5e
topology: v5e:2x2
jax: 0.10.0
libtpu: 0.0.40
codegen_flags: <defaults>
</compile_context>

<pallas_src>
import jax
import jax.numpy as jnp
from jax.experimental import pallas as pl
from jax.experimental.pallas import tpu as pltpu


def _round_up(n, m):
    return ((n + m - 1) // m) * m


def _ode_mlp_kernel(x_ref, c_ref, w1x_ref, w1c_ref, b1_ref, w2_ref, b2_ref, o_ref):
    """One batch tile of:  LeakyReLU_0.1([x|c] @ W1 + b1) @ W2 + b2."""
    # Layer 1: the feature concat is fused into two MXU dots (no HBM concat).
    # TODO(synk): if the integrator can lay x and controls out adjacently in a
    # single (B, in_dim+control_dim) array, merge these into one K=24 dot.
    h = jnp.dot(x_ref[...], w1x_ref[...], preferred_element_type=jnp.float32)
    h = h + jnp.dot(c_ref[...], w1c_ref[...], preferred_element_type=jnp.float32)
    h = h + b1_ref[...]                      # b1 is (1, H_pad), broadcasts over batch
    h = jnp.where(h > 0, h, 0.1 * h)         # LeakyReLU(negative_slope=0.1), f32
    # Layer 2: narrow (TB, out_dim) result, stored directly (no lane padding).
    y = jnp.dot(h, w2_ref[...], preferred_element_type=jnp.float32) + b2_ref[...]
    o_ref[...] = y.astype(o_ref.dtype)


def prepare_ode_params(w1, b1, w2, b2, in_dim):
    """One-time (setup-time) weight preparation, hoisted out of the call path.

    w1: (in_dim + control_dim, hidden_dim)  (PyTorch weight, pre-transposed)
    b1: (hidden_dim,)
    w2: (hidden_dim, in_dim)                (PyTorch weight, pre-transposed)
    b2: (in_dim,)
    Returns (w1_x, w1_c, b1_p, w2_p, b2_p) with the hidden dim zero-padded to
    a multiple of 128 (lane-dense intermediate); the output dim stays narrow.
    """
    total_in, H = w1.shape
    Dout = w2.shape[1]
    H_pad = _round_up(H, 128)

    w1 = w1.astype(jnp.float32)
    w2 = w2.astype(jnp.float32)
    w1_x = jnp.pad(w1[:in_dim, :], ((0, 0), (0, H_pad - H)))
    w1_c = jnp.pad(w1[in_dim:, :], ((0, 0), (0, H_pad - H)))
    b1_p = jnp.pad(jnp.reshape(b1, (1, H)).astype(jnp.float32),
                   ((0, 0), (0, H_pad - H)))
    w2_p = jnp.pad(w2, ((0, H_pad - H), (0, 0)))   # pad rows only; cols stay = Dout
    b2_p = jnp.reshape(b2, (1, Dout)).astype(jnp.float32)
    return (w1_x, w1_c, b1_p, w2_p, b2_p)


def ode_function_forward(x, controls, params, *, batch_tile=1024):
    """Pallas implementation of ODEFunction.forward(t, x) with fused concat.

    x:        (B, in_dim)       float32
    controls: (B, control_dim)  float32
    params:   output of prepare_ode_params (pre-split, pre-padded weights)
    returns:  (B, in_dim)       float32
    """
    w1_x, w1_c, b1_p, w2_p, b2_p = params
    B, in_dim = x.shape
    _, control_dim = controls.shape
    H_pad = w1_x.shape[1]
    Dout = w2_p.shape[1]

    # Batch tile: always a multiple of 8 (sublane), capped at ~B/2 so the grid
    # has >=2 steps (keeps both v7x TensorCores busy); full-batch tile when B
    # is tiny (block == full dim is always legal).
    batch_tile = max(8, _round_up(int(batch_tile), 8))
    TB = min(batch_tile, _round_up(pl.cdiv(B, 2), 8))
    if TB >= B:
        TB = B
    grid = (pl.cdiv(B, TB),)

    # Advisory cost for XLA's scheduler (H_pad is a close upper bound).
    flops = 2 * B * (in_dim + control_dim) * H_pad + 2 * B * H_pad * Dout
    bytes_accessed = 4 * (
        B * (in_dim + control_dim + Dout)
        + (in_dim + control_dim) * H_pad + H_pad
        + H_pad * Dout + Dout
    )
    cost = pl.CostEstimate(flops=flops, transcendentals=0,
                           bytes_accessed=bytes_accessed)

    return pl.pallas_call(
        _ode_mlp_kernel,
        out_shape=jax.ShapeDtypeStruct((B, Dout), x.dtype),
        grid=grid,
        in_specs=[
            pl.BlockSpec((TB, in_dim), lambda i: (i, 0)),          # x batch tile
            pl.BlockSpec((TB, control_dim), lambda i: (i, 0)),     # controls tile
            pl.BlockSpec((in_dim, H_pad), lambda i: (0, 0)),       # W1_x (resident)
            pl.BlockSpec((control_dim, H_pad), lambda i: (0, 0)),  # W1_c (resident)
            pl.BlockSpec((1, H_pad), lambda i: (0, 0)),            # b1   (resident)
            pl.BlockSpec((H_pad, Dout), lambda i: (0, 0)),         # W2   (resident)
            pl.BlockSpec((1, Dout), lambda i: (0, 0)),             # b2   (resident)
        ],
        out_specs=pl.BlockSpec((TB, Dout), lambda i: (i, 0)),      # narrow writeback
        compiler_params=pltpu.CompilerParams(
            dimension_semantics=("parallel",),
        ),
        cost_estimate=cost,
    )(x, controls, w1_x, w1_c, b1_p, w2_p, b2_p)


def reference_forward(x, controls, w1, b1, w2, b2):
    xin = jnp.concatenate((x, controls), axis=-1)
    h = xin @ w1 + jnp.reshape(b1, (1, -1))
    h = jnp.where(h > 0, h, 0.1 * h)
    return h @ w2 + jnp.reshape(b2, (1, -1))


if __name__ == "__main__":
    # Small shapes consistent with the module's args.
    batch = 8
    in_dim = 16
    control_dim = 8
    hidden_dim = 32

    key = jax.random.PRNGKey(0)
    k_x, k_c, k_w1, k_w2, k_xl, k_cl = jax.random.split(key, 6)

    x = jax.random.normal(k_x, (batch, in_dim), dtype=jnp.float32)
    controls = jax.random.normal(k_c, (batch, control_dim), dtype=jnp.float32)

    # nn.init.normal_(w, 0, 0.01) / zeros bias. Stored as
    # (in_features, out_features) == PyTorch weight transposed.
    w1 = 0.01 * jax.random.normal(
        k_w1, (in_dim + control_dim, hidden_dim), dtype=jnp.float32)
    b1 = jnp.zeros((hidden_dim,), dtype=jnp.float32)
    w2 = 0.01 * jax.random.normal(k_w2, (hidden_dim, in_dim), dtype=jnp.float32)
    b2 = jnp.zeros((in_dim,), dtype=jnp.float32)

    # One-time weight prep, hoisted out of the per-evaluation call path.
    params = prepare_ode_params(w1, b1, w2, b2, in_dim)
    fwd = jax.jit(ode_function_forward, static_argnames=("batch_tile",))

    # Tiny-B case (the module's real shapes).
    y = jax.block_until_ready(fwd(x, controls, params))
    y_ref = reference_forward(x, controls, w1, b1, w2, b2)
    assert y.shape == (batch, in_dim)
    assert jnp.allclose(y, y_ref, atol=1e-5, rtol=1e-5)

    # Larger batch that does NOT divide the tile: exercises the multi-step
    # parallel grid and the masked ragged last tile (no input pad, no slice).
    big_b = 300
    xl = jax.random.normal(k_xl, (big_b, in_dim), dtype=jnp.float32)
    cl = jax.random.normal(k_cl, (big_b, control_dim), dtype=jnp.float32)
    yl = jax.block_until_ready(fwd(xl, cl, params))
    yl_ref = reference_forward(xl, cl, w1, b1, w2, b2)
    assert yl.shape == (big_b, in_dim)
    assert jnp.allclose(yl, yl_ref, atol=1e-5, rtol=1e-5)

    print("KERNEL_OK")
</pallas_src>

<mosaic_0001>
module attributes {stable_mosaic.version = 11 : i64} {
  func.func @_ode_mlp_kernel(%arg0: i32, %arg1: memref<8x16xf32, #tpu.memory_space<vmem>>, %arg2: memref<8x8xf32, #tpu.memory_space<vmem>>, %arg3: memref<16x128xf32, #tpu.memory_space<vmem>>, %arg4: memref<8x128xf32, #tpu.memory_space<vmem>>, %arg5: memref<1x128xf32, #tpu.memory_space<vmem>>, %arg6: memref<128x16xf32, #tpu.memory_space<vmem>>, %arg7: memref<1x16xf32, #tpu.memory_space<vmem>>, %arg8: memref<8x16xf32, #tpu.memory_space<vmem>>) attributes {dimension_semantics = [#tpu.dimension_semantics<parallel>], iteration_bounds = array<i64: 1>, scalar_prefetch = 0 : i64, scratch_operands = 0 : i64, tpu.core_type = #tpu.core_type<tc>, window_params = [{transform_indices = @transform_0, window_bounds = array<i64: 8, 16>}, {transform_indices = @transform_1, window_bounds = array<i64: 8, 8>}, {pipeline_mode = #tpu.pipeline_mode<synchronous>, transform_indices = @transform_2, window_bounds = array<i64: 16, 128>}, {pipeline_mode = #tpu.pipeline_mode<synchronous>, transform_indices = @transform_3, window_bounds = array<i64: 8, 128>}, {pipeline_mode = #tpu.pipeline_mode<synchronous>, transform_indices = @transform_4, window_bounds = array<i64: 1, 128>}, {pipeline_mode = #tpu.pipeline_mode<synchronous>, transform_indices = @transform_5, window_bounds = array<i64: 128, 16>}, {pipeline_mode = #tpu.pipeline_mode<synchronous>, transform_indices = @transform_6, window_bounds = array<i64: 1, 16>}, {transform_indices = @transform_7, window_bounds = array<i64: 8, 16>}]} {
    %c0 = arith.constant 0 : index
    %c0_0 = arith.constant 0 : index
    %0 = vector.load %arg1[%c0, %c0_0] : memref<8x16xf32, #tpu.memory_space<vmem>>, vector<8x16xf32>
    %c0_1 = arith.constant 0 : index
    %c0_2 = arith.constant 0 : index
    %1 = vector.load %arg3[%c0_1, %c0_2] : memref<16x128xf32, #tpu.memory_space<vmem>>, vector<16x128xf32>
    %cst = arith.constant dense<0.000000e+00> : vector<8x128xf32>
    %2 = tpu.matmul %0, %1, %cst {dimension_numbers = #tpu.dot_dimension_numbers<[1], [0], [0], [1], [0, 0, 1, 1], [], []>} : vector<8x16xf32>, vector<16x128xf32>, vector<8x128xf32> -> vector<8x128xf32>
    %c0_3 = arith.constant 0 : index
    %c0_4 = arith.constant 0 : index
    %3 = vector.load %arg2[%c0_3, %c0_4] : memref<8x8xf32, #tpu.memory_space<vmem>>, vector<8x8xf32>
    %c0_5 = arith.constant 0 : index
    %c0_6 = arith.constant 0 : index
    %4 = vector.load %arg4[%c0_5, %c0_6] : memref<8x128xf32, #tpu.memory_space<vmem>>, vector<8x128xf32>
    %cst_7 = arith.constant dense<0.000000e+00> : vector<8x128xf32>
    %5 = tpu.matmul %3, %4, %cst_7 {dimension_numbers = #tpu.dot_dimension_numbers<[1], [0], [0], [1], [0, 0, 1, 1], [], []>} : vector<8x8xf32>, vector<8x128xf32>, vector<8x128xf32> -> vector<8x128xf32>
    %6 = arith.addf %2, %5 : vector<8x128xf32>
    %c0_8 = arith.constant 0 : index
    %c0_9 = arith.constant 0 : index
    %7 = vector.load %arg5[%c0_8, %c0_9] : memref<1x128xf32, #tpu.memory_space<vmem>>, vector<1x128xf32>
    %8 = vector.broadcast %7 : vector<1x128xf32> to vector<8x128xf32>
    %9 = arith.addf %6, %8 : vector<8x128xf32>
    %cst_10 = arith.constant 0.000000e+00 : f32
    %10 = vector.broadcast %cst_10 : f32 to vector<8x128xf32>
    %11 = arith.cmpf ogt, %9, %10 : vector<8x128xf32>
    %cst_11 = arith.constant 1.000000e-01 : f32
    %12 = vector.broadcast %cst_11 : f32 to vector<8x128xf32>
    %13 = arith.mulf %12, %9 : vector<8x128xf32>
    %14 = arith.select %11, %9, %13 : vector<8x128xi1>, vector<8x128xf32>
    %c0_12 = arith.constant 0 : index
    %c0_13 = arith.constant 0 : index
    %15 = vector.load %arg6[%c0_12, %c0_13] : memref<128x16xf32, #tpu.memory_space<vmem>>, vector<128x16xf32>
    %cst_14 = arith.constant dense<0.000000e+00> : vector<8x16xf32>
    %16 = tpu.matmul %14, %15, %cst_14 {dimension_numbers = #tpu.dot_dimension_numbers<[1], [0], [0], [1], [0, 0, 1, 1], [], []>} : vector<8x128xf32>, vector<128x16xf32>, vector<8x16xf32> -> vector<8x16xf32>
    %c0_15 = arith.constant 0 : index
    %c0_16 = arith.constant 0 : index
    %17 = vector.load %arg7[%c0_15, %c0_16] : memref<1x16xf32, #tpu.memory_space<vmem>>, vector<1x16xf32>
    %18 = vector.broadcast %17 : vector<1x16xf32> to vector<8x16xf32>
    %19 = arith.addf %16, %18 : vector<8x16xf32>
    %c0_17 = arith.constant 0 : index
    %c0_18 = arith.constant 0 : index
    %20 = vector.load %arg8[%c0_17, %c0_18] : memref<8x16xf32, #tpu.memory_space<vmem>>, vector<8x16xf32>
    tpu.vector_store %arg8[%c0_17, %c0_18], %19 {strides = array<i32>} : memref<8x16xf32, #tpu.memory_space<vmem>>, vector<8x16xf32>,
    return
  }
  func.func @transform_0(%arg0: i32) -> (i32, i32) {
    %c0_i32 = arith.constant 0 : i32
    %c0_i32_0 = arith.constant 0 : i32
    return %arg0, %c0_i32 : i32, i32
  }
  func.func @transform_1(%arg0: i32) -> (i32, i32) {
    %c0_i32 = arith.constant 0 : i32
    %c0_i32_0 = arith.constant 0 : i32
    return %arg0, %c0_i32 : i32, i32
  }
  func.func @transform_2(%arg0: i32) -> (i32, i32) {
    %c0_i32 = arith.constant 0 : i32
    %c0_i32_0 = arith.constant 0 : i32
    %c0_i32_1 = arith.constant 0 : i32
    return %c0_i32, %c0_i32_0 : i32, i32
  }
  func.func @transform_3(%arg0: i32) -> (i32, i32) {
    %c0_i32 = arith.constant 0 : i32
    %c0_i32_0 = arith.constant 0 : i32
    %c0_i32_1 = arith.constant 0 : i32
    return %c0_i32, %c0_i32_0 : i32, i32
  }
  func.func @transform_4(%arg0: i32) -> (i32, i32) {
    %c0_i32 = arith.constant 0 : i32
    %c0_i32_0 = arith.constant 0 : i32
    %c0_i32_1 = arith.constant 0 : i32
    return %c0_i32, %c0_i32_0 : i32, i32
  }
  func.func @transform_5(%arg0: i32) -> (i32, i32) {
    %c0_i32 = arith.constant 0 : i32
    %c0_i32_0 = arith.constant 0 : i32
    %c0_i32_1 = arith.constant 0 : i32
    return %c0_i32, %c0_i32_0 : i32, i32
  }
  func.func @transform_6(%arg0: i32) -> (i32, i32) {
    %c0_i32 = arith.constant 0 : i32
    %c0_i32_0 = arith.constant 0 : i32
    %c0_i32_1 = arith.constant 0 : i32
    return %c0_i32, %c0_i32_0 : i32, i32
  }
  func.func @transform_7(%arg0: i32) -> (i32, i32) {
    %c0_i32 = arith.constant 0 : i32
    %c0_i32_0 = arith.constant 0 : i32
    return %arg0, %c0_i32 : i32, i32
  }
}

</mosaic_0001>

<llo_original>
// kernel: ode_function_forward.1
$region0: #{ode_function_forward.1}
  #allocation0 [shape = 'u32[]', space=smem, size = 0x4, offset = 0x4, fixed_abs, tag = 'smem constant byte address 0x4 - core index']
  #allocation1 [shape = 'u32[72,128]{1,0:T(1,128)}', space=vmem, size = 0x9000, scoped, tag = 'internal scratch']
  %s0 = inlined_call_operand.vmem [shape: f32[8,16], index: 0, kind: input, shape index: {}]
  %s1 = inlined_call_operand.vmem [shape: f32[8,8], index: 1, kind: input, shape index: {}]
  %s2 = inlined_call_operand.vmem [shape: f32[16,128], index: 2, kind: input, shape index: {}]
  %s3 = inlined_call_operand.vmem [shape: f32[8,128], index: 3, kind: input, shape index: {}]
  %s4 = inlined_call_operand.vmem [shape: f32[1,128], index: 4, kind: input, shape index: {}]
  %s5 = inlined_call_operand.vmem [shape: f32[128,16], index: 5, kind: input, shape index: {}]
  %s6 = inlined_call_operand.vmem [shape: f32[1,16], index: 6, kind: input, shape index: {}]
  %s7 = inlined_call_operand.hbm [shape: f32[8,16], index: 7, kind: output, shape index: {}]
  %s8 = sld [smem:[#allocation0]]
  $region38: #{ode_function_forward.1} parent=0
    _
  %s10 = ssub.s32 1, %s8
  %s11 = scalar_select 0, %s10, %s8
  $region1: #{ode_function_forward.1} parent=0
    #allocation2 [shape = 'u8[4096]{0}', space=vmem, size = 0x1000, scoped, tag = 'output window, operand 0, single buffered']
    #allocation3 [shape = 's32[1]{0}', space=sflag, size = 0x4, scoped, tag = 'scoped memory for ode_function_forward.1']
    %12 = vsyncpa [#allocation3], 0
    // Predicated region
    $region2: #{ode_function_forward.1} parent=1 // pred_check
      _
    $region3: #{ode_function_forward.1} parent=1 // pred_check_branch
      %14 = sbr.rel (0) target = $region5
    $region4: #{ode_function_forward.1} parent=1 // pred_region
      _
    $region5: #{ode_function_forward.1} parent=1 // pred_fallthru
      _
    // Predicated region
    $region6: #{ode_function_forward.1} parent=1 // pred_check
      _
    $region7: #{ode_function_forward.1} parent=1 // pred_check_branch
      %16 = sbr.rel (0) target = $region9
    $region8: #{ode_function_forward.1} parent=1 // pred_region
      _
    $region9: #{ode_function_forward.1} parent=1 // pred_fallthru
      _
    // Predicated region
    $region10: #{ode_function_forward.1} parent=1 // pred_check
      _
    $region11: #{ode_function_forward.1} parent=1 // pred_check_branch
      %18 = sbr.rel (0) target = $region13
    $region12: #{ode_function_forward.1} parent=1 // pred_region
      _
    $region13: #{ode_function_forward.1} parent=1 // pred_fallthru
      _
    // Predicated region
    $region14: #{ode_function_forward.1} parent=1 // pred_check
      _
    $region15: #{ode_function_forward.1} parent=1 // pred_check_branch
      %20 = sbr.rel (0) target = $region17
    $region16: #{ode_function_forward.1} parent=1 // pred_region
      _
    $region17: #{ode_function_forward.1} parent=1 // pred_fallthru
      _
    // Predicated region
    $region18: #{ode_function_forward.1} parent=1 // pred_check
      _
    $region19: #{ode_function_forward.1} parent=1 // pred_check_branch
      %22 = sbr.rel (0) target = $region21
    $region20: #{ode_function_forward.1} parent=1 // pred_region
      _
    $region21: #{ode_function_forward.1} parent=1 // pred_fallthru
      _
    // Predicated region
    $region22: #{ode_function_forward.1} parent=1 // pred_check
      _
    $region23: #{ode_function_forward.1} parent=1 // pred_check_branch
      %24 = sbr.rel (0) target = $region25
    $region24: #{ode_function_forward.1} parent=1 // pred_region
      _
    $region25: #{ode_function_forward.1} parent=1 // pred_fallthru
      _
    // Predicated region
    $region26: #{ode_function_forward.1} parent=1 // pred_check
      _
    $region27: #{ode_function_forward.1} parent=1 // pred_check_branch
      %26 = sbr.rel (0) target = $region29
    $region28: #{ode_function_forward.1} parent=1 // pred_region
      _
    $region29: #{ode_function_forward.1} parent=1 // pred_fallthru
      _
    %v27 = vld [vmem:[%s0] sm:$0xff]
    %v28 = vld [vmem:[%s2] sm:$0xff]
    %v29 = vld [vmem:[%s2 + $0x8] sm:$0xff]
    %v30 = vld [vmem:[%s1] sm:$0xff]
    %v31 = vld [vmem:[%s3] sm:$0xff]
    %vm32 = vcmask 64512
    %v34 = vsel %vm32, %v30, 0
    %36 = vmatpush.msra.mxu0 0.0
    %37 = vmatpush.msra.mxu0 0.0
    %38 = vmatpush.msra.mxu0 0.0
    %39 = vmatpush.msra.mxu0 0.0
    %40 = vmatpush.msra.mxu0 0.0
    %41 = vmatpush.msra.mxu0 0.0
    %42 = vmatpush.msra.mxu0 0.0
    %43 = vmatpush.msra.mxu0 0.0
    %44 = vmatpush.msra.mxu0 0.0
    %45 = vmatpush.msra.mxu0 0.0
    %46 = vmatpush.msra.mxu0 0.0
    %47 = vmatpush.msra.mxu0 0.0
    %48 = vmatpush.msra.mxu0 0.0
    %49 = vmatpush.msra.mxu0 0.0
    %50 = vmatpush.msra.mxu0 0.0
    %51 = vmatpush.msra.mxu0 %v31
    %52 = vmatmul.f32.gmra.mxu0 %v34
    %v53 = vpop.f32.mrf.mxu0
    %v54 = vadd.f32 0.0, %v53
    %55 = vdwg.mxu0
    %vm56 = vcmask 130048
    %v58 = vsel %vm56, %v27, 0
    %60 = vmatpush.msra.mxu0 0.0
    %61 = vmatpush.msra.mxu0 0.0
    %62 = vmatpush.msra.mxu0 0.0
    %63 = vmatpush.msra.mxu0 0.0
    %64 = vmatpush.msra.mxu0 0.0
    %65 = vmatpush.msra.mxu0 0.0
    %66 = vmatpush.msra.mxu0 0.0
    %67 = vmatpush.msra.mxu0 0.0
    %68 = vmatpush.msra.mxu0 0.0
    %69 = vmatpush.msra.mxu0 0.0
    %70 = vmatpush.msra.mxu0 0.0
    %71 = vmatpush.msra.mxu0 0.0
    %72 = vmatpush.msra.mxu0 0.0
    %73 = vmatpush.msra.mxu0 0.0
    %74 = vmatpush.msra.mxu0 %v29
    %75 = vmatpush.msra.mxu0 %v28
    %76 = vmatmul.f32.gmra.mxu0 %v58
    %v77 = vpop.f32.mrf.mxu0
    %v78 = vadd.f32 %v54, %v77
    %79 = vdwg.mxu0
    %v80 = vld [vmem:[%s4] sm:$0x1]
    %v82 = vperm.slane %v80, 0
    %v84 = vadd.f32 %v78, %v82
    %vm85 = vcmp.gt.f32.partialorder %v84, 0.0
    %v86 = vmul.f32 %v84, 0.1
    %v87 = vsel %vm85, %v84, %v86
    %v88 = vld [vmem:[%s5] sm:$0xff]
    %v89 = vld [vmem:[%s5 + $0x8] sm:$0xff]
    %v90 = vld [vmem:[%s5 + $0x10] sm:$0xff]
    %v91 = vld [vmem:[%s5 + $0x18] sm:$0xff]
    %v92 = vld [vmem:[%s5 + $0x20] sm:$0xff]
    %v93 = vld [vmem:[%s5 + $0x28] sm:$0xff]
    %v94 = vld [vmem:[%s5 + $0x30] sm:$0xff]
    %v95 = vld [vmem:[%s5 + $0x38] sm:$0xff]
    %v96 = vld [vmem:[%s5 + $0x40] sm:$0xff]
    %v97 = vld [vmem:[%s5 + $0x48] sm:$0xff]
    %v98 = vld [vmem:[%s5 + $0x50] sm:$0xff]
    %v99 = vld [vmem:[%s5 + $0x58] sm:$0xff]
    %v100 = vld [vmem:[%s5 + $0x60] sm:$0xff]
    %v101 = vld [vmem:[%s5 + $0x68] sm:$0xff]
    %v102 = vld [vmem:[%s5 + $0x70] sm:$0xff]
    %v103 = vld [vmem:[%s5 + $0x78] sm:$0xff]
    %v104 = vld [vmem:[%s6] sm:$0x1]
    %v106 = vperm.slane %v104, 0
    %108 = vmatpush.msra.mxu0 %v103
    %109 = vmatpush.msra.mxu0 %v102
    %110 = vmatpush.msra.mxu0 %v101
    %111 = vmatpush.msra.mxu0 %v100
    %112 = vmatpush.msra.mxu0 %v99
    %113 = vmatpush.msra.mxu0 %v98
    %114 = vmatpush.msra.mxu0 %v97
    %115 = vmatpush.msra.mxu0 %v96
    %116 = vmatpush.msra.mxu0 %v95
    %117 = vmatpush.msra.mxu0 %v94
    %118 = vmatpush.msra.mxu0 %v93
    %119 = vmatpush.msra.mxu0 %v92
    %120 = vmatpush.msra.mxu0 %v91
    %121 = vmatpush.msra.mxu0 %v90
    %122 = vmatpush.msra.mxu0 %v89
    %123 = vmatpush.msra.mxu0 %v88
    %124 = vmatmul.f32.gmra.mxu0 %v87
    %v125 = vpop.f32.mrf.mxu0
    %v126 = vadd.f32 %v106, %v125
    %127 = vdwg.mxu0
    %128 = vst.msk [vmem:[#allocation2] sm:$0xff] %vm56, %v126
    // Predicated region
    $region30: #{ode_function_forward.1} parent=1 // pred_check
      _
    $region31: #{ode_function_forward.1} parent=1 // pred_check_branch
      %130 = sbr.rel (0) target = $region33
    $region32: #{ode_function_forward.1} parent=1 // pred_region
      %132 = vsyncadd [#allocation3], 0
      %s134 = sshll.u32 [#allocation2], 4
      %s135 = int_to_ptr.vmem [resolvable:$true] %s134
      %s136 = sshll.u32 %s7, 4
      %s137 = int_to_ptr.hbm [resolvable:$true] %s136
      %139 = dma.vmem_to_hbm [thread:$0]  %s135, 128, %s137, [#allocation3]
    $region33: #{ode_function_forward.1} parent=1 // pred_fallthru
      _
    // Predicated region
    $region34: #{ode_function_forward.1} parent=1 // pred_check
      _
    $region35: #{ode_function_forward.1} parent=1 // pred_check_branch
      %141 = sbr.rel (0) target = $region37
    $region36: #{ode_function_forward.1} parent=1 // pred_region
      %143 = dma.done [#allocation3], 128
    $region37: #{ode_function_forward.1} parent=1 // pred_fallthru
      _
    %144 = vsyncpa [#allocation3], 1

</llo_original>
